<compile_context>
chip_gen: v5e
topology: v5e:2x2
jax: 0.10.0
libtpu: 0.0.40
codegen_flags: <defaults>
</compile_context>

<pallas_src>
import numpy as np
import jax
import jax.numpy as jnp
from jax import lax
from jax.experimental import pallas as pl
from jax.experimental.pallas import tpu as pltpu

_CONTRACT_LAST = (((1,), (1,)), ((), ()))  # contract last axis of both operands (trans_b)


def _round_up(x, m):
    return ((x + m - 1) // m) * m


def _vmem_limit_bytes():
    """Scoped-VMEM limit, derived from the chip's physical VMEM with headroom."""
    try:
        info = pltpu.get_tpu_info()
        cap = getattr(info, "vmem_capacity_bytes", None) or 64 * 1024 * 1024
    except Exception:
        cap = 64 * 1024 * 1024  # conservative (v7x-sized) fallback
    # ~25% headroom for compiler-internal scratch; never ask for more than 96 MiB.
    return int(min(cap * 0.75, 96 * 1024 * 1024))


def _fast_vmem_bytes(tm, d, h):
    """VMEM estimate for the weights-resident path (weights counted double-buffered)."""
    bf16, f32 = 2, 4
    return (2 * tm * d * bf16          # x row blocks (double-buffered)
            + 2 * (2 * d * h) * bf16   # W1 + W2, full
            + 2 * (h + d) * f32        # biases
            + 2 * tm * d * f32)        # f32 output blocks


def _reduce_vmem_bytes(tm, th, d):
    """VMEM estimate for the hidden-reduction path (all blocks double-buffered)."""
    bf16, f32 = 2, 4
    return (2 * tm * d * bf16          # x
            + 2 * th * d * bf16        # W1 slice
            + 2 * d * th * bf16        # W2 slice
            + 2 * (th + d) * f32       # bias slices
            + 2 * tm * d * f32)        # resident f32 output block


def _choose_hidden_block(h, d, tm, preferred, budget):
    cands = []
    for c in (preferred, 512, 256, 128):
        if c <= h and h % c == 0 and c not in cands:
            cands.append(c)
    for th in cands:                          # largest aligned block that fits VMEM
        if _reduce_vmem_bytes(tm, th, d) <= budget:
            return th
    if cands:
        return cands[-1]                      # smallest aligned block
    return h                                  # full extent (always legal)


# ---------------------------------------------------------------------------
# Kernels
# ---------------------------------------------------------------------------

def _ffn_fast_kernel(x_ref, w1_ref, b1_ref, w2_ref, b2_ref, o_ref):
    """Weights fully resident in VMEM; one grid step per row block."""
    h = lax.dot_general(x_ref[...], w1_ref[...], _CONTRACT_LAST,
                        preferred_element_type=jnp.float32)
    h = jnp.maximum(h + b1_ref[...], 0.0).astype(w2_ref.dtype)
    # dropout: identity (module default p=0 / eval mode).
    o_ref[...] = (lax.dot_general(h, w2_ref[...], _CONTRACT_LAST,
                                  preferred_element_type=jnp.float32)
                  + b2_ref[...]).astype(o_ref.dtype)


def _ffn_reduce_kernel(x_ref, w1_ref, b1_ref, w2_ref, b2_ref, o_ref):
    """Hidden dim tiled as the last ('arbitrary') grid axis; accumulate into o_ref."""
    k = pl.program_id(1)

    @pl.when(k == 0)
    def _():
        # initialize the resident f32 output block with the lin2 bias
        o_ref[...] = jnp.zeros_like(o_ref) + b2_ref[...]

    h = lax.dot_general(x_ref[...], w1_ref[...], _CONTRACT_LAST,
                        preferred_element_type=jnp.float32)
    h = jnp.maximum(h + b1_ref[...], 0.0).astype(w2_ref.dtype)
    # dropout: identity (module default p=0 / eval mode).
    o_ref[...] += lax.dot_general(h, w2_ref[...], _CONTRACT_LAST,
                                  preferred_element_type=jnp.float32)


# ---------------------------------------------------------------------------
# Wrapper
# ---------------------------------------------------------------------------

def transformer_ffn_pallas(x, lin1_weight, lin1_bias, lin2_weight, lin2_bias,
                           *, block_m=256, force_reduce=False):
    """Fused TransformerFFN forward.

    x:            (..., dim)
    lin1_weight:  (dim_hidden, dim)     (PyTorch layout, NOT transposed)
    lin1_bias:    (dim_hidden,)
    lin2_weight:  (dim, dim_hidden)     (PyTorch layout, NOT transposed)
    lin2_bias:    (dim,)
    """
    x = jnp.asarray(x)
    orig_shape = x.shape
    orig_dtype = x.dtype
    d = orig_shape[-1]
    h = lin1_weight.shape[0]

    # bf16 matmul operands (f32 accumulation happens in-kernel via preferred_element_type)
    x2 = x.reshape(-1, d).astype(jnp.bfloat16)
    w1 = jnp.asarray(lin1_weight).astype(jnp.bfloat16)          # (h, d)
    w2 = jnp.asarray(lin2_weight).astype(jnp.bfloat16)          # (d, h)
    b1 = jnp.asarray(lin1_bias, jnp.float32).reshape(1, h)
    b2 = jnp.asarray(lin2_bias, jnp.float32).reshape(1, d)

    m = x2.shape[0]

    vmem_limit = _vmem_limit_bytes()
    budget = int(vmem_limit * 0.85)

    # row blocking: bf16-sublane aligned (multiple of 16), partial last block handled by Pallas
    tm = min(block_m, _round_up(max(m, 1), 16))
    if pl.cdiv(m, tm) == 1 and m > 16:
        # give both TensorCores work on megacore / v7x
        tm = _round_up(pl.cdiv(m, 2), 16)
    grid_m = pl.cdiv(m, tm)

    flops = 4 * m * d * h

    use_fast = (not force_reduce) and _fast_vmem_bytes(tm, d, h) <= budget

    if use_fast:
        grid = (grid_m,)
        in_specs = [
            pl.BlockSpec((tm, d), lambda i: (i, 0)),   # x rows
            pl.BlockSpec((h, d), lambda i: (0, 0)),    # W1 (resident, DMA'd once)
            pl.BlockSpec((1, h), lambda i: (0, 0)),    # b1
            pl.BlockSpec((d, h), lambda i: (0, 0)),    # W2 (resident, DMA'd once)
            pl.BlockSpec((1, d), lambda i: (0, 0)),    # b2
        ]
        out_spec = pl.BlockSpec((tm, d), lambda i: (i, 0))
        kernel = _ffn_fast_kernel
        dims = ("parallel",)
        weight_reads = 1
    else:
        th = _choose_hidden_block(h, d, tm, 512, budget)
        grid = (grid_m, h // th)
        in_specs = [
            pl.BlockSpec((tm, d), lambda i, k: (i, 0)),   # x rows
            pl.BlockSpec((th, d), lambda i, k: (k, 0)),   # W1 hidden slice
            pl.BlockSpec((1, th), lambda i, k: (0, k)),   # b1 hidden slice
            pl.BlockSpec((d, th), lambda i, k: (0, k)),   # W2 hidden slice
            pl.BlockSpec((1, d), lambda i, k: (0, 0)),    # b2
        ]
        out_spec = pl.BlockSpec((tm, d), lambda i, k: (i, 0))
        kernel = _ffn_reduce_kernel
        dims = ("parallel", "arbitrary")
        weight_reads = grid_m

    bytes_accessed = (m * d * (2 + 4)                       # x in (bf16) + out (f32)
                      + weight_reads * 2 * d * h * 2        # weight streaming (bf16)
                      + 4 * (h + d))                        # biases
    try:
        cost = pl.CostEstimate(flops=int(flops),
                               bytes_accessed=int(bytes_accessed),
                               transcendentals=0)
    except Exception:
        cost = None

    out = pl.pallas_call(
        kernel,
        out_shape=jax.ShapeDtypeStruct((m, d), jnp.float32),
        grid_spec=pltpu.PrefetchScalarGridSpec(
            num_scalar_prefetch=0,
            grid=grid,
            in_specs=in_specs,
            out_specs=out_spec,
        ),
        compiler_params=pltpu.CompilerParams(
            dimension_semantics=dims,
            vmem_limit_bytes=vmem_limit,
        ),
        cost_estimate=cost,
    )(x2, w1, b1, w2, b2)

    if jnp.issubdtype(orig_dtype, jnp.floating):
        out = out.astype(orig_dtype)
    return out.reshape(orig_shape)


def reference_ffn(x, w1, b1, w2, b2):
    """Plain numpy re-implementation of the PyTorch forward (dropout=identity)."""
    x = np.asarray(x, np.float32)
    w1 = np.asarray(w1, np.float32)
    b1 = np.asarray(b1, np.float32)
    w2 = np.asarray(w2, np.float32)
    b2 = np.asarray(b2, np.float32)
    hidden = np.maximum(x @ w1.T + b1, 0.0)
    return hidden @ w2.T + b2


if __name__ == "__main__":
    key = jax.random.PRNGKey(0)
    k1, k2, k3, k4, k5, k6 = jax.random.split(key, 6)

    bsz, seq, dim, dim_hidden = 2, 8, 32, 64

    x = jax.random.normal(k1, (bsz, seq, dim), jnp.float32)

    # xavier-uniform-style init (scale only; exact distribution irrelevant here)
    lim1 = float(np.sqrt(6.0 / (dim + dim_hidden)))
    lim2 = float(np.sqrt(6.0 / (dim_hidden + dim)))
    lin1_weight = jax.random.uniform(k2, (dim_hidden, dim), jnp.float32,
                                     minval=-lim1, maxval=lim1)
    lin2_weight = jax.random.uniform(k3, (dim, dim_hidden), jnp.float32,
                                     minval=-lim2, maxval=lim2)
    lin1_bias = jax.random.normal(k4, (dim_hidden,), jnp.float32) * 0.01
    lin2_bias = jax.random.normal(k5, (dim,), jnp.float32) * 0.01

    # --- path 1: weights-resident fast path (default for these small shapes) ---
    y = transformer_ffn_pallas(x, lin1_weight, lin1_bias, lin2_weight, lin2_bias)
    y = jax.block_until_ready(y)

    ref = reference_ffn(np.asarray(x), np.asarray(lin1_weight), np.asarray(lin1_bias),
                        np.asarray(lin2_weight), np.asarray(lin2_bias))

    assert y.shape == (bsz, seq, dim), y.shape
    assert y.dtype == x.dtype, y.dtype
    y_np = np.asarray(y, np.float32)
    assert np.all(np.isfinite(y_np)), "kernel produced non-finite output"
    assert np.allclose(y_np, ref, rtol=5e-2, atol=5e-2), (  # bf16 matmul tolerance
        float(np.max(np.abs(y_np - ref))))

    # --- path 2: hidden-reduction path + multiple/partial row blocks ---
    x2 = jax.random.normal(k6, (3, 37, dim), jnp.float32)
    y2 = transformer_ffn_pallas(x2, lin1_weight, lin1_bias, lin2_weight, lin2_bias,
                                force_reduce=True)
    y2 = jax.block_until_ready(y2)
    ref2 = reference_ffn(np.asarray(x2), np.asarray(lin1_weight), np.asarray(lin1_bias),
                         np.asarray(lin2_weight), np.asarray(lin2_bias))
    y2_np = np.asarray(y2, np.float32)
    assert y2.shape == (3, 37, dim), y2.shape
    assert np.all(np.isfinite(y2_np)), "reduce-path kernel produced non-finite output"
    assert np.allclose(y2_np, ref2, rtol=5e-2, atol=5e-2), (
        float(np.max(np.abs(y2_np - ref2))))

    print("KERNEL_OK")
</pallas_src>

<mosaic_0001>
module attributes {stable_mosaic.version = 11 : i64} {
  func.func @_ffn_fast_kernel(%arg0: i32, %arg1: memref<16x32xbf16, #tpu.memory_space<vmem>>, %arg2: memref<64x32xbf16, #tpu.memory_space<vmem>>, %arg3: memref<1x64xf32, #tpu.memory_space<vmem>>, %arg4: memref<32x64xbf16, #tpu.memory_space<vmem>>, %arg5: memref<1x32xf32, #tpu.memory_space<vmem>>, %arg6: memref<16x32xf32, #tpu.memory_space<vmem>>) attributes {dimension_semantics = [#tpu.dimension_semantics<parallel>], iteration_bounds = array<i64: 1>, scalar_prefetch = 0 : i64, scratch_operands = 0 : i64, tpu.core_type = #tpu.core_type<tc>, window_params = [{transform_indices = @transform_0, window_bounds = array<i64: 16, 32>}, {pipeline_mode = #tpu.pipeline_mode<synchronous>, transform_indices = @transform_1, window_bounds = array<i64: 64, 32>}, {pipeline_mode = #tpu.pipeline_mode<synchronous>, transform_indices = @transform_2, window_bounds = array<i64: 1, 64>}, {pipeline_mode = #tpu.pipeline_mode<synchronous>, transform_indices = @transform_3, window_bounds = array<i64: 32, 64>}, {pipeline_mode = #tpu.pipeline_mode<synchronous>, transform_indices = @transform_4, window_bounds = array<i64: 1, 32>}, {transform_indices = @transform_5, window_bounds = array<i64: 16, 32>}]} {
    %c0 = arith.constant 0 : index
    %c0_0 = arith.constant 0 : index
    %0 = vector.load %arg1[%c0, %c0_0] : memref<16x32xbf16, #tpu.memory_space<vmem>>, vector<16x32xbf16>
    %c0_1 = arith.constant 0 : index
    %c0_2 = arith.constant 0 : index
    %1 = vector.load %arg2[%c0_1, %c0_2] : memref<64x32xbf16, #tpu.memory_space<vmem>>, vector<64x32xbf16>
    %cst = arith.constant dense<0.000000e+00> : vector<16x64xf32>
    %2 = tpu.matmul %0, %1, %cst {dimension_numbers = #tpu.dot_dimension_numbers<[1], [1], [0], [0], [0, 0, 1, 0], [], []>} : vector<16x32xbf16>, vector<64x32xbf16>, vector<16x64xf32> -> vector<16x64xf32>
    %c0_3 = arith.constant 0 : index
    %c0_4 = arith.constant 0 : index
    %3 = vector.load %arg3[%c0_3, %c0_4] : memref<1x64xf32, #tpu.memory_space<vmem>>, vector<1x64xf32>
    %4 = vector.broadcast %3 : vector<1x64xf32> to vector<16x64xf32>
    %5 = arith.addf %2, %4 : vector<16x64xf32>
    %cst_5 = arith.constant 0.000000e+00 : f32
    %6 = vector.broadcast %cst_5 : f32 to vector<16x64xf32>
    %7 = arith.maximumf %5, %6 : vector<16x64xf32>
    %8 = arith.truncf %7 : vector<16x64xf32> to vector<16x64xbf16>
    %c0_6 = arith.constant 0 : index
    %c0_7 = arith.constant 0 : index
    %9 = vector.load %arg4[%c0_6, %c0_7] : memref<32x64xbf16, #tpu.memory_space<vmem>>, vector<32x64xbf16>
    %cst_8 = arith.constant dense<0.000000e+00> : vector<16x32xf32>
    %10 = tpu.matmul %8, %9, %cst_8 {dimension_numbers = #tpu.dot_dimension_numbers<[1], [1], [0], [0], [0, 0, 1, 0], [], []>} : vector<16x64xbf16>, vector<32x64xbf16>, vector<16x32xf32> -> vector<16x32xf32>
    %c0_9 = arith.constant 0 : index
    %c0_10 = arith.constant 0 : index
    %11 = vector.load %arg5[%c0_9, %c0_10] : memref<1x32xf32, #tpu.memory_space<vmem>>, vector<1x32xf32>
    %12 = vector.broadcast %11 : vector<1x32xf32> to vector<16x32xf32>
    %13 = arith.addf %10, %12 : vector<16x32xf32>
    %c0_11 = arith.constant 0 : index
    %c0_12 = arith.constant 0 : index
    %14 = vector.load %arg6[%c0_11, %c0_12] : memref<16x32xf32, #tpu.memory_space<vmem>>, vector<16x32xf32>
    tpu.vector_store %arg6[%c0_11, %c0_12], %13 {strides = array<i32>} : memref<16x32xf32, #tpu.memory_space<vmem>>, vector<16x32xf32>,
    return
  }
  func.func @transform_0(%arg0: i32) -> (i32, i32) {
    %c0_i32 = arith.constant 0 : i32
    %c0_i32_0 = arith.constant 0 : i32
    return %arg0, %c0_i32 : i32, i32
  }
  func.func @transform_1(%arg0: i32) -> (i32, i32) {
    %c0_i32 = arith.constant 0 : i32
    %c0_i32_0 = arith.constant 0 : i32
    %c0_i32_1 = arith.constant 0 : i32
    return %c0_i32, %c0_i32_0 : i32, i32
  }
  func.func @transform_2(%arg0: i32) -> (i32, i32) {
    %c0_i32 = arith.constant 0 : i32
    %c0_i32_0 = arith.constant 0 : i32
    %c0_i32_1 = arith.constant 0 : i32
    return %c0_i32, %c0_i32_0 : i32, i32
  }
  func.func @transform_3(%arg0: i32) -> (i32, i32) {
    %c0_i32 = arith.constant 0 : i32
    %c0_i32_0 = arith.constant 0 : i32
    %c0_i32_1 = arith.constant 0 : i32
    return %c0_i32, %c0_i32_0 : i32, i32
  }
  func.func @transform_4(%arg0: i32) -> (i32, i32) {
    %c0_i32 = arith.constant 0 : i32
    %c0_i32_0 = arith.constant 0 : i32
    %c0_i32_1 = arith.constant 0 : i32
    return %c0_i32, %c0_i32_0 : i32, i32
  }
  func.func @transform_5(%arg0: i32) -> (i32, i32) {
    %c0_i32 = arith.constant 0 : i32
    %c0_i32_0 = arith.constant 0 : i32
    return %arg0, %c0_i32 : i32, i32
  }
}

</mosaic_0001>

<llo_original>
// kernel: tpu_custom_call.1
$region0: #{tpu_custom_call.1}
  #allocation0 [shape = 'u32[]', space=smem, size = 0x4, offset = 0x4, fixed_abs, tag = 'smem constant byte address 0x4 - core index']
  #allocation1 [shape = 'u32[72,128]{1,0:T(1,128)}', space=vmem, size = 0x9000, scoped, tag = 'internal scratch']
  %s0 = inlined_call_operand.vmem [shape: bf16[16,32], index: 0, kind: input, shape index: {}]
  %s1 = inlined_call_operand.vmem [shape: bf16[64,32], index: 1, kind: input, shape index: {}]
  %s2 = inlined_call_operand.vmem [shape: f32[1,64], index: 2, kind: input, shape index: {}]
  %s3 = inlined_call_operand.vmem [shape: bf16[32,64], index: 3, kind: input, shape index: {}]
  %s4 = inlined_call_operand.vmem [shape: f32[1,32], index: 4, kind: input, shape index: {}]
  %s5 = inlined_call_operand.hbm [shape: f32[16,32], index: 5, kind: output, shape index: {}]
  %s6 = sld [smem:[#allocation0]]
  $region30: #{tpu_custom_call.1} parent=0
    _
  %s8 = ssub.s32 1, %s6
  %s9 = scalar_select 0, %s8, %s6
  $region1: #{tpu_custom_call.1} parent=0
    #allocation2 [shape = 'u8[8192]{0}', space=vmem, size = 0x2000, scoped, tag = 'output window, operand 0, single buffered']
    #allocation3 [shape = 's32[1]{0}', space=sflag, size = 0x4, scoped, tag = 'scoped memory for tpu_custom_call.1']
    %10 = vsyncpa [#allocation3], 0
    // Predicated region
    $region2: #{tpu_custom_call.1} parent=1 // pred_check
      _
    $region3: #{tpu_custom_call.1} parent=1 // pred_check_branch
      %12 = sbr.rel (0) target = $region5
    $region4: #{tpu_custom_call.1} parent=1 // pred_region
      _
    $region5: #{tpu_custom_call.1} parent=1 // pred_fallthru
      _
    // Predicated region
    $region6: #{tpu_custom_call.1} parent=1 // pred_check
      _
    $region7: #{tpu_custom_call.1} parent=1 // pred_check_branch
      %14 = sbr.rel (0) target = $region9
    $region8: #{tpu_custom_call.1} parent=1 // pred_region
      _
    $region9: #{tpu_custom_call.1} parent=1 // pred_fallthru
      _
    // Predicated region
    $region10: #{tpu_custom_call.1} parent=1 // pred_check
      _
    $region11: #{tpu_custom_call.1} parent=1 // pred_check_branch
      %16 = sbr.rel (0) target = $region13
    $region12: #{tpu_custom_call.1} parent=1 // pred_region
      _
    $region13: #{tpu_custom_call.1} parent=1 // pred_fallthru
      _
    // Predicated region
    $region14: #{tpu_custom_call.1} parent=1 // pred_check
      _
    $region15: #{tpu_custom_call.1} parent=1 // pred_check_branch
      %18 = sbr.rel (0) target = $region17
    $region16: #{tpu_custom_call.1} parent=1 // pred_region
      _
    $region17: #{tpu_custom_call.1} parent=1 // pred_fallthru
      _
    // Predicated region
    $region18: #{tpu_custom_call.1} parent=1 // pred_check
      _
    $region19: #{tpu_custom_call.1} parent=1 // pred_check_branch
      %20 = sbr.rel (0) target = $region21
    $region20: #{tpu_custom_call.1} parent=1 // pred_region
      _
    $region21: #{tpu_custom_call.1} parent=1 // pred_fallthru
      _
    %v22 = vld [vmem:[%s0] sm:$0xf]
    %v23 = vld [vmem:[%s0 + $0x4] sm:$0xf]
    %v24 = vld [vmem:[%s1] sm:$0xf]
    %v25 = vld [vmem:[%s1 + $0x4] sm:$0xf]
    %v26 = vld [vmem:[%s1 + $0x8] sm:$0xf]
    %v27 = vld [vmem:[%s1 + $0xc] sm:$0xf]
    %v28 = vld [vmem:[%s1 + $0x10] sm:$0xf]
    %v29 = vld [vmem:[%s1 + $0x14] sm:$0xf]
    %v30 = vld [vmem:[%s1 + $0x18] sm:$0xf]
    %v31 = vld [vmem:[%s1 + $0x1c] sm:$0xf]
    %v32 = vld [vmem:[%s2] sm:$0x1]
    %v34 = vperm.slane %v32, 0
    %v38 = vunpack.c.l.b16 %v22
    %v39 = vunpack.c.l.b16 %v23
    %v40 = vpack.c.b16 %v39, %v38
    %v49 = vunpack.c.l.b16 %v24
    %v50 = vunpack.c.l.b16 %v25
    %v51 = vunpack.c.l.b16 %v26
    %v52 = vunpack.c.l.b16 %v27
    %v53 = vunpack.c.l.b16 %v28
    %v54 = vunpack.c.l.b16 %v29
    %v55 = vunpack.c.l.b16 %v30
    %v56 = vunpack.c.l.b16 %v31
    %v57 = vpack.c.b16 %v50, %v49
    %v58 = vpack.c.b16 %v52, %v51
    %v59 = vpack.c.b16 %v54, %v53
    %v60 = vpack.c.b16 %v56, %v55
    %vm61 = vcmask 261120
    %v63 = vsel %vm61, %v40, 0
    %v66 = vsel %vm61, %v57, 0
    %v69 = vsel %vm61, %v58, 0
    %v72 = vsel %vm61, %v59, 0
    %v75 = vsel %vm61, %v60, 0
    %77 = vmatpush.bf16.xpose.msra.mxu0 0
    %78 = vmatpush.bf16.xpose.msra.mxu0 0
    %79 = vmatpush.bf16.xpose.msra.mxu0 0
    %80 = vmatpush.bf16.xpose.msra.mxu0 0
    %81 = vmatpush.bf16.xpose.msra.mxu0 %v75
    %82 = vmatpush.bf16.xpose.msra.mxu0 %v72
    %83 = vmatpush.bf16.xpose.msra.mxu0 %v69
    %84 = vmatpush.bf16.xpose.msra.mxu0 %v66
    %85 = vmatmul.bf16.gmra.mxu0 %v63
    %v86 = vpop.f32.mrf.mxu0
    %v87 = vadd.f32 %v34, %v86
    %v88 = vpop.f32.mrf.mxu0
    %v89 = vadd.f32 %v34, %v88
    %90 = vdwg.mxu0
    %v91 = vmax.f32 %v87, 0.0
    %v92 = vmax.f32 %v89, 0.0
    %v93 = vpack.c.bf16 %v92, %v91
    %v94 = vld [vmem:[%s3] sm:$0xf]
    %v95 = vld [vmem:[%s3 + $0x4] sm:$0xf]
    %v96 = vld [vmem:[%s3 + $0x8] sm:$0xf]
    %v97 = vld [vmem:[%s3 + $0xc] sm:$0xf]
    %v98 = vld [vmem:[%s4] sm:$0x1]
    %v100 = vperm.slane %v98, 0
    %v106 = vunpack.c.l.b16 %v94
    %v107 = vunpack.c.l.b16 %v95
    %v108 = vunpack.c.l.b16 %v96
    %v109 = vunpack.c.l.b16 %v97
    %v110 = vpack.c.b16 %v107, %v106
    %v111 = vpack.c.b16 %v109, %v108
    %vm112 = vcmask 523264
    %v114 = vsel %vm112, %v93, 0
    %v117 = vsel %vm112, %v110, 0
    %v120 = vsel %vm112, %v111, 0
    %122 = vmatpush.bf16.xpose.msra.mxu0 0
    %123 = vmatpush.bf16.xpose.msra.mxu0 0
    %124 = vmatpush.bf16.xpose.msra.mxu0 0
    %125 = vmatpush.bf16.xpose.msra.mxu0 0
    %126 = vmatpush.bf16.xpose.msra.mxu0 0
    %127 = vmatpush.bf16.xpose.msra.mxu0 0
    %128 = vmatpush.bf16.xpose.msra.mxu0 %v120
    %129 = vmatpush.bf16.xpose.msra.mxu0 %v117
    %130 = vmatmul.bf16.gmra.mxu0 %v114
    %v131 = vpop.f32.mrf.mxu0
    %v132 = vadd.f32 %v100, %v131
    %v133 = vpop.f32.mrf.mxu0
    %v134 = vadd.f32 %v100, %v133
    %135 = vdwg.mxu0
    %136 = vst.msk [vmem:[#allocation2] sm:$0xff] %vm61, %v132
    %137 = vst.msk [vmem:[#allocation2 + $0x8] sm:$0xff] %vm61, %v134
    // Predicated region
    $region22: #{tpu_custom_call.1} parent=1 // pred_check
      _
    $region23: #{tpu_custom_call.1} parent=1 // pred_check_branch
      %139 = sbr.rel (0) target = $region25
    $region24: #{tpu_custom_call.1} parent=1 // pred_region
      %141 = vsyncadd [#allocation3], 0
      %s142 = sshll.u32 [#allocation2], 4
      %s143 = int_to_ptr.vmem [resolvable:$true] %s142
      %s144 = sshll.u32 %s5, 4
      %s145 = int_to_ptr.hbm [resolvable:$true] %s144
      %150 = dma.vmem_to_hbm [thread:$0]  %s143, 256, %s145, [#allocation3], 128, 128, 8
    $region25: #{tpu_custom_call.1} parent=1 // pred_fallthru
      _
    // Predicated region
    $region26: #{tpu_custom_call.1} parent=1 // pred_check
      _
    $region27: #{tpu_custom_call.1} parent=1 // pred_check_branch
      %152 = sbr.rel (0) target = $region29
    $region28: #{tpu_custom_call.1} parent=1 // pred_region
      %154 = dma.done [#allocation3], 256
    $region29: #{tpu_custom_call.1} parent=1 // pred_fallthru
      _
    %155 = vsyncpa [#allocation3], 1

</llo_original>
